<compile_context>
chip_gen: v5e
topology: v5e:2x2
jax: 0.10.0
libtpu: 0.0.40
codegen_flags: <defaults>
</compile_context>

<pallas_src>
import functools

import numpy as np
import jax
import jax.numpy as jnp
from jax.experimental import pallas as pl
from jax.experimental.pallas import tpu as pltpu


def _round_up(x, m):
    return (x + m - 1) // m * m


# ---------------------------------------------------------------------------
# Kernel: fused 4-layer MLP  out = tanh(tanh(tanh(x@W1+b1)@W2+b2)@W3+b3)@W4+b4
# All parameters live in one packed, zero-padded (rows, width) VMEM buffer.
# ---------------------------------------------------------------------------
def mlp1_kernel(x_ref, p_ref, out_ref, *, obs_pad, width, out_width, offs,
                matmul_dtype):
    def mm(a, w):
        # Optional bf16 MXU operands; accumulate in f32 (preferred_element_type).
        return jnp.dot(a.astype(matmul_dtype), w.astype(matmul_dtype),
                       preferred_element_type=jnp.float32)

    x = x_ref[...]                                            # (TB, obs_pad)

    w1 = p_ref[offs["w1"]: offs["w1"] + obs_pad, :]           # (obs_pad, W), pad rows = 0
    b1 = p_ref[offs["b1"]: offs["b1"] + 1, :]                 # (1, W)
    h = jnp.tanh(mm(x, w1) + b1)

    w2 = p_ref[offs["w2"]: offs["w2"] + width, :]             # (W, W), zero-padded
    b2 = p_ref[offs["b2"]: offs["b2"] + 1, :]
    h = jnp.tanh(mm(h, w2) + b2)

    w3 = p_ref[offs["w3"]: offs["w3"] + width, :]
    b3 = p_ref[offs["b3"]: offs["b3"] + 1, :]
    h = jnp.tanh(mm(h, w3) + b3)

    w4 = p_ref[offs["w4"]: offs["w4"] + width, :out_width]    # lane-aligned column slice
    b4 = p_ref[offs["b4"]: offs["b4"] + 1, :out_width]
    # Lane-dense store: (TB, out_width) slab; real columns are [:act_dim], rest stay 0.
    out_ref[...] = mm(h, w4) + b4


# ---------------------------------------------------------------------------
# Parameter construction (same shapes as MLP1.__init__) and host-side packing.
# ---------------------------------------------------------------------------
def make_mlp1_params(obs_dim, act_dim, input_network_scale=10,
                     output_network_scale=10, key=None):
    """Deterministic synthetic parameters matching MLP1.__init__ shapes.

    Weights are stored as (in_features, out_features) == torch weight transposed,
    so y = x @ W + b.
    """
    hid1 = obs_dim * input_network_scale
    hid3 = act_dim * output_network_scale
    hid2 = int(np.sqrt(hid1 * hid3))
    logvar_speed = 10 * hid3 // 48

    if key is None:
        key = jax.random.PRNGKey(0)
    ks = jax.random.split(key, 8)

    def linear(kw, kb, fan_in, fan_out):
        bound = 1.0 / np.sqrt(fan_in)
        w = jax.random.uniform(kw, (fan_in, fan_out), jnp.float32, -bound, bound)
        b = jax.random.uniform(kb, (fan_out,), jnp.float32, -bound, bound)
        return w, b

    w1, b1 = linear(ks[0], ks[1], obs_dim, hid1)
    w2, b2 = linear(ks[2], ks[3], hid1, hid2)
    w3, b3 = linear(ks[4], ks[5], hid2, hid3)
    w4, b4 = linear(ks[6], ks[7], hid3, act_dim)
    log_vars = jnp.zeros((logvar_speed, act_dim), jnp.float32)  # torch.zeros init
    return dict(w1=w1, b1=b1, w2=w2, b2=b2, w3=w3, b3=b3, w4=w4, b4=b4,
                log_vars=log_vars,
                dims=dict(obs_dim=obs_dim, hid1=hid1, hid2=hid2,
                          hid3=hid3, act_dim=act_dim))


def pack_mlp1_params(params):
    """Pack all weights/biases into one zero-padded (rows, width) f32 buffer.

    width = round_up(max hidden width, 128) so every intermediate is lane-dense.
    W1 is padded to round_up(obs_dim, 8) rows; W2/W3/W4 K-dims are padded to `width`
    rows; each bias occupies the first row of an 8-row block.  All padding is zero,
    which (with tanh(0)==0) keeps every padded lane of the output exactly zero.
    """
    d = params["dims"]
    obs_dim, hid1, hid2, hid3, act_dim = (d["obs_dim"], d["hid1"], d["hid2"],
                                          d["hid3"], d["act_dim"])
    width = _round_up(max(hid1, hid2, hid3, act_dim, 128), 128)
    obs_pad = _round_up(obs_dim, 8)
    out_width = _round_up(act_dim, 128)

    blocks, offs = [], {}
    row = 0

    def add(name, arr, rows_padded):
        nonlocal row
        r, c = arr.shape
        blk = jnp.zeros((rows_padded, width), jnp.float32)
        blk = blk.at[:r, :c].set(arr.astype(jnp.float32))
        offs[name] = row
        blocks.append(blk)
        row += rows_padded

    add("w1", params["w1"], obs_pad)
    add("b1", params["b1"].reshape(1, -1), 8)
    add("w2", params["w2"], width)
    add("b2", params["b2"].reshape(1, -1), 8)
    add("w3", params["w3"], width)
    add("b3", params["b3"].reshape(1, -1), 8)
    add("w4", params["w4"], width)
    add("b4", params["b4"].reshape(1, -1), 8)

    packed = jnp.concatenate(blocks, axis=0)
    meta = dict(obs_dim=obs_dim, act_dim=act_dim, obs_pad=obs_pad,
                width=width, out_width=out_width,
                rows=int(packed.shape[0]), offs=offs)
    return packed, meta


# ---------------------------------------------------------------------------
# Batch-tile selection: fixed bucket set (no recompile per batch size) and
# >= 2 grid steps whenever batch > 16 so the "parallel" axis can be sharded
# across both v7x TensorCores.
# ---------------------------------------------------------------------------
_TB_BUCKETS = (8, 128, 512, 2048)


def _pick_batch_tile(batch, block_batch):
    assert block_batch % 8 == 0, "block_batch must be a multiple of 8"
    buckets = sorted({b for b in _TB_BUCKETS if b <= block_batch} | {block_batch})
    cap = _round_up(pl.cdiv(batch, 2), 8) if batch > 16 else 8
    return max(b for b in buckets if b <= cap)


# ---------------------------------------------------------------------------
# Forward wrapper (Pallas equivalent of MLP1.forward, vector path).
# ---------------------------------------------------------------------------
def mlp1_forward(vector_obs, params, packed=None, meta=None, *,
                 block_batch=4096, matmul_dtype=jnp.float32):
    """Returns (x, log_vars, initial_state) like the torch module.

    image_obs / s / masks / flags are unused by the torch forward's compute path.
    Pass `packed, meta` from pack_mlp1_params() to avoid re-packing every call.
    """
    if packed is None or meta is None:
        packed, meta = pack_mlp1_params(params)

    x = jnp.asarray(vector_obs, jnp.float32)
    batch, obs_dim = x.shape
    assert obs_dim == meta["obs_dim"]
    act_dim = meta["act_dim"]
    obs_pad, width, out_width, rows = (meta["obs_pad"], meta["width"],
                                       meta["out_width"], meta["rows"])

    tb = _pick_batch_tile(batch, block_batch)
    batch_pad = _round_up(batch, tb)
    pad_rows, pad_cols = batch_pad - batch, obs_pad - obs_dim
    if pad_rows or pad_cols:
        x = jnp.pad(x, ((0, pad_rows), (0, pad_cols)))   # zero pad: ragged tile + K-align

    kernel = functools.partial(mlp1_kernel, obs_pad=obs_pad, width=width,
                               out_width=out_width, offs=meta["offs"],
                               matmul_dtype=matmul_dtype)

    out_pad = pl.pallas_call(
        kernel,
        out_shape=jax.ShapeDtypeStruct((batch_pad, out_width), jnp.float32),
        grid=(batch_pad // tb,),
        in_specs=[
            pl.BlockSpec((tb, obs_pad), lambda i: (i, 0)),      # x: pipelined batch tiles
            # Constant index_map -> packed params DMA'd once per call and kept
            # VMEM-resident across grid steps (double-buffer cost is only ~217 KiB).
            pl.BlockSpec((rows, width), lambda i: (0, 0)),
        ],
        out_specs=pl.BlockSpec((tb, out_width), lambda i: (i, 0)),  # lane-dense slab
        compiler_params=pltpu.CompilerParams(
            dimension_semantics=("parallel",)),                 # shard batch across TCs
    )(x, packed)

    out = out_pad[:batch, :act_dim]

    # Input-independent reduction hoisted out of the kernel.
    log_vars = jnp.sum(params["log_vars"], axis=0) - 1.0
    initial_state = jnp.zeros((1, 1), jnp.float32)
    return out, log_vars, initial_state


# ---------------------------------------------------------------------------
# Pure-JAX reference (mirrors the torch forward).
# ---------------------------------------------------------------------------
def _reference(vector_obs, params):
    x = jnp.asarray(vector_obs, jnp.float32)
    x = jnp.tanh(x @ params["w1"] + params["b1"])
    x = jnp.tanh(x @ params["w2"] + params["b2"])
    x = jnp.tanh(x @ params["w3"] + params["b3"])
    x = x @ params["w4"] + params["b4"]
    lv = jnp.sum(params["log_vars"], axis=0) - 1.0
    return x, lv


if __name__ == "__main__":
    obs_dim, act_dim = 4, 2
    key = jax.random.PRNGKey(0)
    pkey, xkey, xkey2 = jax.random.split(key, 3)

    params = make_mlp1_params(obs_dim, act_dim, key=pkey)
    packed, meta = pack_mlp1_params(params)

    # Small deployment-like batch (single grid step, tb=8).
    batch = 2
    vector_obs = jax.random.normal(xkey, (batch, obs_dim), jnp.float32)
    out, log_vars, init_state = mlp1_forward(vector_obs, params, packed, meta)
    jax.block_until_ready((out, log_vars, init_state))

    ref_out, ref_lv = _reference(vector_obs, params)
    np.testing.assert_allclose(np.asarray(out), np.asarray(ref_out),
                               rtol=1e-5, atol=1e-5)
    np.testing.assert_allclose(np.asarray(log_vars), np.asarray(ref_lv),
                               rtol=1e-5, atol=1e-5)
    assert out.shape == (batch, act_dim)
    assert init_state.shape == (1, 1)

    # Larger batch: multi-step grid (>=2 steps -> both TCs on v7x) + ragged padding.
    big_batch = 1000
    vector_obs2 = jax.random.normal(xkey2, (big_batch, obs_dim), jnp.float32)
    out2, _, _ = mlp1_forward(vector_obs2, params, packed, meta)
    jax.block_until_ready(out2)
    ref_out2, _ = _reference(vector_obs2, params)
    np.testing.assert_allclose(np.asarray(out2), np.asarray(ref_out2),
                               rtol=1e-5, atol=1e-5)
    assert out2.shape == (big_batch, act_dim)

    # Optional bf16-MXU-operand path (v6e/v7x headroom; still legal on v5e MXU).
    out3, _, _ = mlp1_forward(vector_obs2, params, packed, meta,
                              matmul_dtype=jnp.bfloat16)
    jax.block_until_ready(out3)
    np.testing.assert_allclose(np.asarray(out3), np.asarray(ref_out2),
                               rtol=5e-2, atol=5e-2)

    print("KERNEL_OK")
</pallas_src>

<mosaic_0001>
module attributes {stable_mosaic.version = 11 : i64} {
  func.func @mlp1_kernel(%arg0: i32, %arg1: memref<8x8xf32, #tpu.memory_space<vmem>>, %arg2: memref<424x128xf32, #tpu.memory_space<vmem>>, %arg3: memref<8x128xf32, #tpu.memory_space<vmem>>) attributes {dimension_semantics = [#tpu.dimension_semantics<parallel>], iteration_bounds = array<i64: 1>, scalar_prefetch = 0 : i64, scratch_operands = 0 : i64, tpu.core_type = #tpu.core_type<tc>, window_params = [{transform_indices = @transform_0, window_bounds = array<i64: 8, 8>}, {pipeline_mode = #tpu.pipeline_mode<synchronous>, transform_indices = @transform_1, window_bounds = array<i64: 424, 128>}, {transform_indices = @transform_2, window_bounds = array<i64: 8, 128>}]} {
    %c0 = arith.constant 0 : index
    %c0_0 = arith.constant 0 : index
    %0 = vector.load %arg1[%c0, %c0_0] : memref<8x8xf32, #tpu.memory_space<vmem>>, vector<8x8xf32>
    %c0_1 = arith.constant 0 : index
    %c0_2 = arith.constant 0 : index
    %1 = vector.load %arg2[%c0_1, %c0_2] : memref<424x128xf32, #tpu.memory_space<vmem>>, vector<8x128xf32>
    %c8 = arith.constant 8 : index
    %c0_3 = arith.constant 0 : index
    %2 = vector.load %arg2[%c8, %c0_3] : memref<424x128xf32, #tpu.memory_space<vmem>>, vector<1x128xf32>
    %cst = arith.constant dense<0.000000e+00> : vector<8x128xf32>
    %3 = tpu.matmul %0, %1, %cst {dimension_numbers = #tpu.dot_dimension_numbers<[1], [0], [0], [1], [0, 0, 1, 1], [], []>} : vector<8x8xf32>, vector<8x128xf32>, vector<8x128xf32> -> vector<8x128xf32>
    %4 = vector.broadcast %2 : vector<1x128xf32> to vector<8x128xf32>
    %5 = arith.addf %3, %4 : vector<8x128xf32>
    %6 = math.tanh %5 : vector<8x128xf32>
    %c16 = arith.constant 16 : index
    %c0_4 = arith.constant 0 : index
    %7 = vector.load %arg2[%c16, %c0_4] : memref<424x128xf32, #tpu.memory_space<vmem>>, vector<128x128xf32>
    %c144 = arith.constant 144 : index
    %c0_5 = arith.constant 0 : index
    %8 = vector.load %arg2[%c144, %c0_5] : memref<424x128xf32, #tpu.memory_space<vmem>>, vector<1x128xf32>
    %cst_6 = arith.constant dense<0.000000e+00> : vector<8x128xf32>
    %9 = tpu.matmul %6, %7, %cst_6 {dimension_numbers = #tpu.dot_dimension_numbers<[1], [0], [0], [1], [0, 0, 1, 1], [], []>} : vector<8x128xf32>, vector<128x128xf32>, vector<8x128xf32> -> vector<8x128xf32>
    %10 = vector.broadcast %8 : vector<1x128xf32> to vector<8x128xf32>
    %11 = arith.addf %9, %10 : vector<8x128xf32>
    %12 = math.tanh %11 : vector<8x128xf32>
    %c152 = arith.constant 152 : index
    %c0_7 = arith.constant 0 : index
    %13 = vector.load %arg2[%c152, %c0_7] : memref<424x128xf32, #tpu.memory_space<vmem>>, vector<128x128xf32>
    %c280 = arith.constant 280 : index
    %c0_8 = arith.constant 0 : index
    %14 = vector.load %arg2[%c280, %c0_8] : memref<424x128xf32, #tpu.memory_space<vmem>>, vector<1x128xf32>
    %cst_9 = arith.constant dense<0.000000e+00> : vector<8x128xf32>
    %15 = tpu.matmul %12, %13, %cst_9 {dimension_numbers = #tpu.dot_dimension_numbers<[1], [0], [0], [1], [0, 0, 1, 1], [], []>} : vector<8x128xf32>, vector<128x128xf32>, vector<8x128xf32> -> vector<8x128xf32>
    %16 = vector.broadcast %14 : vector<1x128xf32> to vector<8x128xf32>
    %17 = arith.addf %15, %16 : vector<8x128xf32>
    %18 = math.tanh %17 : vector<8x128xf32>
    %c288 = arith.constant 288 : index
    %c0_10 = arith.constant 0 : index
    %19 = vector.load %arg2[%c288, %c0_10] : memref<424x128xf32, #tpu.memory_space<vmem>>, vector<128x128xf32>
    %c416 = arith.constant 416 : index
    %c0_11 = arith.constant 0 : index
    %20 = vector.load %arg2[%c416, %c0_11] : memref<424x128xf32, #tpu.memory_space<vmem>>, vector<1x128xf32>
    %cst_12 = arith.constant dense<0.000000e+00> : vector<8x128xf32>
    %21 = tpu.matmul %18, %19, %cst_12 {dimension_numbers = #tpu.dot_dimension_numbers<[1], [0], [0], [1], [0, 0, 1, 1], [], []>} : vector<8x128xf32>, vector<128x128xf32>, vector<8x128xf32> -> vector<8x128xf32>
    %22 = vector.broadcast %20 : vector<1x128xf32> to vector<8x128xf32>
    %23 = arith.addf %21, %22 : vector<8x128xf32>
    %c0_13 = arith.constant 0 : index
    %c0_14 = arith.constant 0 : index
    %24 = vector.load %arg3[%c0_13, %c0_14] : memref<8x128xf32, #tpu.memory_space<vmem>>, vector<8x128xf32>
    tpu.vector_store %arg3[%c0_13, %c0_14], %23 {strides = array<i32>} : memref<8x128xf32, #tpu.memory_space<vmem>>, vector<8x128xf32>,
    return
  }
  func.func @transform_0(%arg0: i32) -> (i32, i32) {
    %c0_i32 = arith.constant 0 : i32
    %c0_i32_0 = arith.constant 0 : i32
    return %arg0, %c0_i32 : i32, i32
  }
  func.func @transform_1(%arg0: i32) -> (i32, i32) {
    %c0_i32 = arith.constant 0 : i32
    %c0_i32_0 = arith.constant 0 : i32
    %c0_i32_1 = arith.constant 0 : i32
    return %c0_i32, %c0_i32_0 : i32, i32
  }
  func.func @transform_2(%arg0: i32) -> (i32, i32) {
    %c0_i32 = arith.constant 0 : i32
    %c0_i32_0 = arith.constant 0 : i32
    return %arg0, %c0_i32 : i32, i32
  }
}

</mosaic_0001>

<llo_original>
// kernel: tpu_custom_call.1
$region0: #{tpu_custom_call.1}
  #allocation0 [shape = 'u32[]', space=smem, size = 0x4, offset = 0x4, fixed_abs, tag = 'smem constant byte address 0x4 - core index']
  #allocation1 [shape = 'u32[72,128]{1,0:T(1,128)}', space=vmem, size = 0x9000, scoped, tag = 'internal scratch']
  %s0 = inlined_call_operand.hbm [shape: f32[8,8], index: 0, kind: input, shape index: {}]
  %s1 = inlined_call_operand.hbm [shape: f32[424,128], index: 1, kind: input, shape index: {}]
  %s2 = inlined_call_operand.hbm [shape: f32[8,128], index: 2, kind: output, shape index: {}]
  %s3 = sld [smem:[#allocation0]]
  $region26: #{tpu_custom_call.1} parent=0
    _
  %s5 = ssub.s32 1, %s3
  %s6 = scalar_select 0, %s5, %s3
  $region1: #{tpu_custom_call.1} parent=0
    #allocation2 [shape = 'u8[4096]{0}', space=vmem, size = 0x1000, scoped, tag = 'input window, operand 0, single buffered']
    #allocation3 [shape = 's32[1]{0}', space=sflag, size = 0x4, scoped, tag = 'scoped memory for tpu_custom_call.1']
    #allocation4 [shape = 's32[1]{0}', space=sflag, size = 0x4, scoped, tag = 'scoped memory for tpu_custom_call.1']
    #allocation5 [shape = 'u8[217088]{0}', space=vmem, size = 0x35000, scoped, tag = 'input window, operand 1, single buffered']
    #allocation6 [shape = 's32[1]{0}', space=sflag, size = 0x4, scoped, tag = 'scoped memory for tpu_custom_call.1']
    #allocation7 [shape = 'u8[4096]{0}', space=vmem, size = 0x1000, scoped, tag = 'output window, operand 0, single buffered']
    %7 = vsyncpa [#allocation3], 0
    %8 = vsyncpa [#allocation6], 0
    %9 = vsyncpa [#allocation4], 0
    // Predicated region
    $region2: #{tpu_custom_call.1} parent=1 // pred_check
      _
    $region3: #{tpu_custom_call.1} parent=1 // pred_check_branch
      %11 = sbr.rel (0) target = $region5
    $region4: #{tpu_custom_call.1} parent=1 // pred_region
      %13 = vsyncadd [#allocation3], 0
      %s15 = sshll.u32 %s0, 4
      %s16 = int_to_ptr.hbm [resolvable:$true] %s15
      %s17 = sshll.u32 [#allocation2], 4
      %s18 = int_to_ptr.vmem [resolvable:$true] %s17
      %20 = dma.hbm_to_vmem [thread:$0]  %s16, 128, %s18, [#allocation3]
    $region5: #{tpu_custom_call.1} parent=1 // pred_fallthru
      _
    // Predicated region
    $region6: #{tpu_custom_call.1} parent=1 // pred_check
      _
    $region7: #{tpu_custom_call.1} parent=1 // pred_check_branch
      %22 = sbr.rel (0) target = $region9
    $region8: #{tpu_custom_call.1} parent=1 // pred_region
      %24 = vsyncadd [#allocation6], 0
      %s25 = sshll.u32 %s1, 4
      %s26 = int_to_ptr.hbm [resolvable:$true] %s25
      %s27 = sshll.u32 [#allocation5], 4
      %s28 = int_to_ptr.vmem [resolvable:$true] %s27
      %33 = dma.hbm_to_vmem [thread:$0]  %s26, 6784, %s28, [#allocation6], 128, 128, 8
    $region9: #{tpu_custom_call.1} parent=1 // pred_fallthru
      _
    // Predicated region
    $region10: #{tpu_custom_call.1} parent=1 // pred_check
      _
    $region11: #{tpu_custom_call.1} parent=1 // pred_check_branch
      %35 = sbr.rel (0) target = $region13
    $region12: #{tpu_custom_call.1} parent=1 // pred_region
      %37 = dma.done [#allocation3], 128
    $region13: #{tpu_custom_call.1} parent=1 // pred_fallthru
      _
    // Predicated region
    $region14: #{tpu_custom_call.1} parent=1 // pred_check
      _
    $region15: #{tpu_custom_call.1} parent=1 // pred_check_branch
      %39 = sbr.rel (0) target = $region17
    $region16: #{tpu_custom_call.1} parent=1 // pred_region
      %41 = dma.done [#allocation6], 6784
    $region17: #{tpu_custom_call.1} parent=1 // pred_fallthru
      _
    %v42 = vld [vmem:[#allocation2] sm:$0xff]
    %v43 = vld [vmem:[#allocation5] sm:$0xff]
    %v44 = vld [vmem:[#allocation5 + $0x8] sm:$0x1]
    %v45 = vperm.slane %v44, 0
    %vm46 = vcmask 64512
    %v48 = vsel %vm46, %v42, 0
    %50 = vmatpush.msra.mxu0 0.0
    %51 = vmatpush.msra.mxu0 0.0
    %52 = vmatpush.msra.mxu0 0.0
    %53 = vmatpush.msra.mxu0 0.0
    %54 = vmatpush.msra.mxu0 0.0
    %55 = vmatpush.msra.mxu0 0.0
    %56 = vmatpush.msra.mxu0 0.0
    %57 = vmatpush.msra.mxu0 0.0
    %58 = vmatpush.msra.mxu0 0.0
    %59 = vmatpush.msra.mxu0 0.0
    %60 = vmatpush.msra.mxu0 0.0
    %61 = vmatpush.msra.mxu0 0.0
    %62 = vmatpush.msra.mxu0 0.0
    %63 = vmatpush.msra.mxu0 0.0
    %64 = vmatpush.msra.mxu0 0.0
    %65 = vmatpush.msra.mxu0 %v43
    %66 = vmatmul.f32.gmra.mxu0 %v48
    %v67 = vpop.f32.mrf.mxu0
    %v68 = vadd.f32 %v45, %v67
    %69 = vdwg.mxu0
    %v70 = vtanh.pop %v68
    %v71 = vld [vmem:[#allocation5 + $0x10] sm:$0xff]
    %v72 = vld [vmem:[#allocation5 + $0x18] sm:$0xff]
    %v73 = vld [vmem:[#allocation5 + $0x20] sm:$0xff]
    %v74 = vld [vmem:[#allocation5 + $0x28] sm:$0xff]
    %v75 = vld [vmem:[#allocation5 + $0x30] sm:$0xff]
    %v76 = vld [vmem:[#allocation5 + $0x38] sm:$0xff]
    %v77 = vld [vmem:[#allocation5 + $0x40] sm:$0xff]
    %v78 = vld [vmem:[#allocation5 + $0x48] sm:$0xff]
    %v79 = vld [vmem:[#allocation5 + $0x50] sm:$0xff]
    %v80 = vld [vmem:[#allocation5 + $0x58] sm:$0xff]
    %v81 = vld [vmem:[#allocation5 + $0x60] sm:$0xff]
    %v82 = vld [vmem:[#allocation5 + $0x68] sm:$0xff]
    %v83 = vld [vmem:[#allocation5 + $0x70] sm:$0xff]
    %v84 = vld [vmem:[#allocation5 + $0x78] sm:$0xff]
    %v85 = vld [vmem:[#allocation5 + $0x80] sm:$0xff]
    %v86 = vld [vmem:[#allocation5 + $0x88] sm:$0xff]
    %v87 = vld [vmem:[#allocation5 + $0x90] sm:$0x1]
    %v88 = vperm.slane %v87, 0
    %89 = vmatpush.msra.mxu0 %v86
    %90 = vmatpush.msra.mxu0 %v85
    %91 = vmatpush.msra.mxu0 %v84
    %92 = vmatpush.msra.mxu0 %v83
    %93 = vmatpush.msra.mxu0 %v82
    %94 = vmatpush.msra.mxu0 %v81
    %95 = vmatpush.msra.mxu0 %v80
    %96 = vmatpush.msra.mxu0 %v79
    %97 = vmatpush.msra.mxu0 %v78
    %98 = vmatpush.msra.mxu0 %v77
    %99 = vmatpush.msra.mxu0 %v76
    %100 = vmatpush.msra.mxu0 %v75
    %101 = vmatpush.msra.mxu0 %v74
    %102 = vmatpush.msra.mxu0 %v73
    %103 = vmatpush.msra.mxu0 %v72
    %104 = vmatpush.msra.mxu0 %v71
    %105 = vmatmul.f32.gmra.mxu0 %v70
    %v106 = vpop.f32.mrf.mxu0
    %v107 = vadd.f32 %v88, %v106
    %108 = vdwg.mxu0
    %v109 = vtanh.pop %v107
    %v110 = vld [vmem:[#allocation5 + $0x98] sm:$0xff]
    %v111 = vld [vmem:[#allocation5 + $0xa0] sm:$0xff]
    %v112 = vld [vmem:[#allocation5 + $0xa8] sm:$0xff]
    %v113 = vld [vmem:[#allocation5 + $0xb0] sm:$0xff]
    %v114 = vld [vmem:[#allocation5 + $0xb8] sm:$0xff]
    %v115 = vld [vmem:[#allocation5 + $0xc0] sm:$0xff]
    %v116 = vld [vmem:[#allocation5 + $0xc8] sm:$0xff]
    %v117 = vld [vmem:[#allocation5 + $0xd0] sm:$0xff]
    %v118 = vld [vmem:[#allocation5 + $0xd8] sm:$0xff]
    %v119 = vld [vmem:[#allocation5 + $0xe0] sm:$0xff]
    %v120 = vld [vmem:[#allocation5 + $0xe8] sm:$0xff]
    %v121 = vld [vmem:[#allocation5 + $0xf0] sm:$0xff]
    %v122 = vld [vmem:[#allocation5 + $0xf8] sm:$0xff]
    %v123 = vld [vmem:[#allocation5 + $0x100] sm:$0xff]
    %v124 = vld [vmem:[#allocation5 + $0x108] sm:$0xff]
    %v125 = vld [vmem:[#allocation5 + $0x110] sm:$0xff]
    %v126 = vld [vmem:[#allocation5 + $0x118] sm:$0x1]
    %v127 = vperm.slane %v126, 0
    %128 = vmatpush.msra.mxu0 %v125
    %129 = vmatpush.msra.mxu0 %v124
    %130 = vmatpush.msra.mxu0 %v123
    %131 = vmatpush.msra.mxu0 %v122
    %132 = vmatpush.msra.mxu0 %v121
    %133 = vmatpush.msra.mxu0 %v120
    %134 = vmatpush.msra.mxu0 %v119
    %135 = vmatpush.msra.mxu0 %v118
    %136 = vmatpush.msra.mxu0 %v117
    %137 = vmatpush.msra.mxu0 %v116
    %138 = vmatpush.msra.mxu0 %v115
    %139 = vmatpush.msra.mxu0 %v114
    %140 = vmatpush.msra.mxu0 %v113
    %141 = vmatpush.msra.mxu0 %v112
    %142 = vmatpush.msra.mxu0 %v111
    %143 = vmatpush.msra.mxu0 %v110
    %144 = vmatmul.f32.gmra.mxu0 %v109
    %v145 = vpop.f32.mrf.mxu0
    %v146 = vadd.f32 %v127, %v145
    %147 = vdwg.mxu0
    %v148 = vtanh.pop %v146
    %v149 = vld [vmem:[#allocation5 + $0x120] sm:$0xff]
    %v150 = vld [vmem:[#allocation5 + $0x128] sm:$0xff]
    %v151 = vld [vmem:[#allocation5 + $0x130] sm:$0xff]
    %v152 = vld [vmem:[#allocation5 + $0x138] sm:$0xff]
    %v153 = vld [vmem:[#allocation5 + $0x140] sm:$0xff]
    %v154 = vld [vmem:[#allocation5 + $0x148] sm:$0xff]
    %v155 = vld [vmem:[#allocation5 + $0x150] sm:$0xff]
    %v156 = vld [vmem:[#allocation5 + $0x158] sm:$0xff]
    %v157 = vld [vmem:[#allocation5 + $0x160] sm:$0xff]
    %v158 = vld [vmem:[#allocation5 + $0x168] sm:$0xff]
    %v159 = vld [vmem:[#allocation5 + $0x170] sm:$0xff]
    %v160 = vld [vmem:[#allocation5 + $0x178] sm:$0xff]
    %v161 = vld [vmem:[#allocation5 + $0x180] sm:$0xff]
    %v162 = vld [vmem:[#allocation5 + $0x188] sm:$0xff]
    %v163 = vld [vmem:[#allocation5 + $0x190] sm:$0xff]
    %v164 = vld [vmem:[#allocation5 + $0x198] sm:$0xff]
    %v165 = vld [vmem:[#allocation5 + $0x1a0] sm:$0x1]
    %v166 = vperm.slane %v165, 0
    %167 = vmatpush.msra.mxu0 %v164
    %168 = vmatpush.msra.mxu0 %v163
    %169 = vmatpush.msra.mxu0 %v162
    %170 = vmatpush.msra.mxu0 %v161
    %171 = vmatpush.msra.mxu0 %v160
    %172 = vmatpush.msra.mxu0 %v159
    %173 = vmatpush.msra.mxu0 %v158
    %174 = vmatpush.msra.mxu0 %v157
    %175 = vmatpush.msra.mxu0 %v156
    %176 = vmatpush.msra.mxu0 %v155
    %177 = vmatpush.msra.mxu0 %v154
    %178 = vmatpush.msra.mxu0 %v153
    %179 = vmatpush.msra.mxu0 %v152
    %180 = vmatpush.msra.mxu0 %v151
    %181 = vmatpush.msra.mxu0 %v150
    %182 = vmatpush.msra.mxu0 %v149
    %183 = vmatmul.f32.gmra.mxu0 %v148
    %v184 = vpop.f32.mrf.mxu0
    %v185 = vadd.f32 %v166, %v184
    %186 = vdwg.mxu0
    %187 = vst [vmem:[#allocation7] sm:$0xff] %v185
    // Predicated region
    $region18: #{tpu_custom_call.1} parent=1 // pred_check
      _
    $region19: #{tpu_custom_call.1} parent=1 // pred_check_branch
      %189 = sbr.rel (0) target = $region21
    $region20: #{tpu_custom_call.1} parent=1 // pred_region
      %191 = vsyncadd [#allocation4], 0
      %s193 = sshll.u32 [#allocation7], 4
      %s194 = int_to_ptr.vmem [resolvable:$true] %s193
      %s195 = sshll.u32 %s2, 4
      %s196 = int_to_ptr.hbm [resolvable:$true] %s195
      %198 = dma.vmem_to_hbm [thread:$0]  %s194, 128, %s196, [#allocation4]
    $region21: #{tpu_custom_call.1} parent=1 // pred_fallthru
      _
    // Predicated region
    $region22: #{tpu_custom_call.1} parent=1 // pred_check
      _
    $region23: #{tpu_custom_call.1} parent=1 // pred_check_branch
      %200 = sbr.rel (0) target = $region25
    $region24: #{tpu_custom_call.1} parent=1 // pred_region
      %202 = dma.done [#allocation4], 128
    $region25: #{tpu_custom_call.1} parent=1 // pred_fallthru
      _
    %203 = vsyncpa [#allocation3], 1
    %204 = vsyncpa [#allocation6], 1
    %205 = vsyncpa [#allocation4], 1

</llo_original>
